<compile_context>
chip_gen: v7x
topology: tpu7x:2x2x1
jax: 0.10.0
libtpu: 0.0.40
codegen_flags: <defaults>
</compile_context>

<pallas_src>
import functools

import jax
import jax.numpy as jnp
from jax.experimental import pallas as pl
from jax.experimental.pallas import tpu as pltpu


LANE = 128  # vreg lane width; feature dims are zero-padded to multiples of this


def _round_up(x, m):
    return ((x + m - 1) // m) * m


# ----------------------------- kernel bodies -------------------------------- #

def _attention_core(x_ref, wqkv_ref, *, num_heads, embed_dim, head_dim):
    """QKV (single wide MXU matmul) + per-head softmax attention.

    x_ref:    (Bt, N, Cp) bf16   tokens, C zero-padded to Cp (lane-dense)
    wqkv_ref: (Cp, Kp)    bf16   columns = [Q_h0..Q_hH-1 | K... | V...],
                                 1/sqrt(hd) folded into the Q columns.
    returns o: (Bt*H, N, hd) f32, softmax-normalized attention output.
    """
    H, C, hd = num_heads, embed_dim, head_dim
    Bt, N, Cp = x_ref.shape
    Kp = wqkv_ref.shape[1]

    # One lane-dense matmul for Q, K, V of all heads (no activation broadcast).
    x2d = x_ref[...].reshape(Bt * N, Cp)                         # bf16
    qkv = jnp.dot(x2d, wqkv_ref[...],
                  preferred_element_type=jnp.float32)            # (Bt*N, Kp) f32
    qkv = qkv.astype(jnp.bfloat16).reshape(Bt, N, Kp)

    # Split per (sequence, head): static hd-wide lane slices (cheap relayout).
    q_l, k_l, v_l = [], [], []
    for b in range(Bt):
        qkv_b = qkv[b]                                           # (N, Kp)
        for h in range(H):
            q_l.append(qkv_b[:, h * hd:(h + 1) * hd])
            k_l.append(qkv_b[:, C + h * hd:C + (h + 1) * hd])
            v_l.append(qkv_b[:, 2 * C + h * hd:2 * C + (h + 1) * hd])
    q = jnp.stack(q_l)                                           # (Bt*H, N, hd)
    k = jnp.stack(k_l)
    v = jnp.stack(v_l)

    # Batched (over Bt*H) scaled-dot-product attention; softmax math in f32.
    # TODO(synk): tile the KV axis with online softmax once H*N^2*4B approaches
    # a few MiB (matters first on v7x's 64 MiB VMEM).
    s = jnp.einsum('gqd,gkd->gqk', q, k,
                   preferred_element_type=jnp.float32)           # (Bt*H, N, N)
    s = s - jnp.max(s, axis=-1, keepdims=True)
    p = jnp.exp(s)
    l = jnp.sum(p, axis=-1, keepdims=True)                       # (Bt*H, N, 1)
    o = jnp.einsum('gqk,gkd->gqd', p.astype(jnp.bfloat16), v,
                   preferred_element_type=jnp.float32)           # (Bt*H, N, hd)
    # Normalize after P@V (O(N*hd) muls); approx reciprocal runs on the EUP.
    # Inference-grade accuracy; switch approx=False for tight-accuracy eval.
    return o * pl.reciprocal(l, approx=True)


def _mhsa_fused_kernel(x_ref, wqkv_ref, wproj_ref, bias_ref, o_ref, *,
                       num_heads, embed_dim, head_dim):
    """QKV + attention + head-concat + output projection (+ cls passthrough)."""
    H, C, hd = num_heads, embed_dim, head_dim
    Bt, N, Cp = x_ref.shape
    M = Bt * N

    o = _attention_core(x_ref, wqkv_ref,
                        num_heads=H, embed_dim=C, head_dim=hd)   # (Bt*H, N, hd)

    # Head concat = lane concat of per-head outputs (token-major layout),
    # zero-padded to Cp lanes.  No identity-weight MXU pass.
    rows = []
    for b in range(Bt):
        rows.append(jnp.concatenate([o[b * H + h] for h in range(H)], axis=-1))
    o_cat = rows[0] if Bt == 1 else jnp.concatenate(rows, axis=0)     # (M, C) f32
    if Cp > C:
        o_cat = jnp.concatenate(
            [o_cat, jnp.zeros((M, Cp - C), jnp.float32)], axis=-1)    # (M, Cp)

    # Output projection for ALL rows in one Cp-deep matmul (the cls rows are
    # overwritten by the select below; the extra row per sequence is free).
    proj = jnp.dot(o_cat.astype(jnp.bfloat16), wproj_ref[...],
                   preferred_element_type=jnp.float32) + bias_ref[...]

    # Token 0 of every sequence (cls) bypasses the projection; select in f32,
    # then a single full-tile (unmasked) store.
    row_ids = jax.lax.broadcasted_iota(jnp.int32, (M, Cp), 0)
    is_cls = (row_ids % N) == 0
    out2d = jnp.where(is_cls, o_cat, proj)
    o_ref[...] = out2d.reshape(Bt, N, Cp).astype(o_ref.dtype)


def _mhsa_attn_kernel(x_ref, wqkv_ref, o_ref, *, num_heads, embed_dim, head_dim):
    """Attention only; emits per-head output in (Bt*H, N, hd) layout (bf16)."""
    o = _attention_core(x_ref, wqkv_ref, num_heads=num_heads,
                        embed_dim=embed_dim, head_dim=head_dim)
    o_ref[...] = o.astype(o_ref.dtype)


def _proj_kernel(x_ref, w_ref, b_ref, o_ref):
    """Lane-dense dense layer: o = x @ W + b (enable_hcs path only)."""
    o_ref[...] = (jnp.dot(x_ref[...], w_ref[...],
                          preferred_element_type=jnp.float32)
                  + b_ref[...]).astype(o_ref.dtype)


# ------------------------------- pallas calls -------------------------------- #

def _fused_call(x_p, wqkv, wproj, bias, *, num_heads, embed_dim, head_dim, bt):
    B, N, Cp = x_p.shape
    Kp = wqkv.shape[1]
    H, hd = num_heads, head_dim
    kernel = functools.partial(_mhsa_fused_kernel, num_heads=H,
                               embed_dim=embed_dim, head_dim=hd)
    flops = 2 * B * N * Cp * Kp + 4 * B * H * N * N * hd + 2 * B * N * Cp * Cp
    bytes_accessed = (2 * x_p.size + 2 * wqkv.size + 2 * wproj.size
                      + 4 * bias.size + 4 * B * N * Cp)
    return pl.pallas_call(
        kernel,
        out_shape=jax.ShapeDtypeStruct((B, N, Cp), jnp.float32),
        grid_spec=pltpu.PrefetchScalarGridSpec(
            num_scalar_prefetch=0,
            grid=(B // bt,),
            in_specs=[
                pl.BlockSpec((bt, N, Cp), lambda i: (i, 0, 0)),
                pl.BlockSpec((Cp, Kp), lambda i: (0, 0)),
                pl.BlockSpec((Cp, Cp), lambda i: (0, 0)),
                pl.BlockSpec((1, Cp), lambda i: (0, 0)),
            ],
            out_specs=pl.BlockSpec((bt, N, Cp), lambda i: (i, 0, 0)),
        ),
        compiler_params=pltpu.CompilerParams(
            dimension_semantics=("parallel",),          # >=2 steps -> 2 v7x TCs
            vmem_limit_bytes=48 * 1024 * 1024),
        cost_estimate=pl.CostEstimate(
            flops=flops, transcendentals=B * H * N * N,
            bytes_accessed=bytes_accessed),
    )(x_p, wqkv, wproj, bias)


def _attn_call(x_p, wqkv, *, num_heads, embed_dim, head_dim, bt):
    B, N, Cp = x_p.shape
    Kp = wqkv.shape[1]
    H, hd = num_heads, head_dim
    kernel = functools.partial(_mhsa_attn_kernel, num_heads=H,
                               embed_dim=embed_dim, head_dim=hd)
    return pl.pallas_call(
        kernel,
        out_shape=jax.ShapeDtypeStruct((B * H, N, hd), jnp.bfloat16),
        grid_spec=pltpu.PrefetchScalarGridSpec(
            num_scalar_prefetch=0,
            grid=(B // bt,),
            in_specs=[
                pl.BlockSpec((bt, N, Cp), lambda i: (i, 0, 0)),
                pl.BlockSpec((Cp, Kp), lambda i: (0, 0)),
            ],
            out_specs=pl.BlockSpec((bt * H, N, hd), lambda i: (i, 0, 0)),
        ),
        compiler_params=pltpu.CompilerParams(
            dimension_semantics=("parallel",),
            vmem_limit_bytes=48 * 1024 * 1024),
    )(x_p, wqkv)


def _proj_pallas(x2d, w_full, bias):
    M, Cp = x2d.shape
    tm = 256 if M % 256 == 0 else M                     # tiny toy -> single tile
    return pl.pallas_call(
        _proj_kernel,
        out_shape=jax.ShapeDtypeStruct((M, Cp), jnp.float32),
        grid_spec=pltpu.PrefetchScalarGridSpec(
            num_scalar_prefetch=0,
            grid=(M // tm,),
            in_specs=[
                pl.BlockSpec((tm, Cp), lambda i: (i, 0)),
                pl.BlockSpec((Cp, Cp), lambda i: (0, 0)),
                pl.BlockSpec((1, Cp), lambda i: (0, 0)),
            ],
            out_specs=pl.BlockSpec((tm, Cp), lambda i: (i, 0)),
        ),
        compiler_params=pltpu.CompilerParams(
            dimension_semantics=("parallel",)),
    )(x2d, w_full, bias)


# ----------------------------- wrappers / prep ------------------------------- #

def prepare_mhsa_params(w_qkv, w_proj, b_proj, num_heads):
    """One-time host-side weight re-arrangement into lane-padded bf16 slabs.

    Keep this OUT of the per-forward jitted path (weights are static).
    torch Linear weights are (out_features, in_features)."""
    C = w_proj.shape[0]
    H = num_heads
    hd = C // H
    Cp = _round_up(C, LANE)
    Kp = _round_up(3 * C, LANE)
    scale = 1.0 / (hd ** 0.5)

    wqkv_t = jnp.asarray(w_qkv, jnp.float32).T              # (C, 3C): cols Q|K|V
    w2d = jnp.concatenate(
        [wqkv_t[:, :C] * scale, wqkv_t[:, C:2 * C], wqkv_t[:, 2 * C:]], axis=1)
    w2d = jnp.pad(w2d, ((0, Cp - C), (0, Kp - 3 * C)))       # (Cp, Kp)

    wp2d = jnp.pad(jnp.asarray(w_proj, jnp.float32).T,
                   ((0, Cp - C), (0, Cp - C)))               # (Cp, Cp)
    bias = jnp.pad(jnp.asarray(b_proj, jnp.float32),
                   (0, Cp - C)).reshape(1, Cp)               # (1, Cp)

    return {"wqkv": w2d.astype(jnp.bfloat16),
            "wproj": wp2d.astype(jnp.bfloat16),
            "bias": bias}


@functools.partial(jax.jit, static_argnames=("num_heads", "enable_hcs"))
def mhsa_forward(x, wqkv, wproj, bias, *, num_heads, enable_hcs=False):
    """Pallas-backed forward matching the PyTorch module (eval mode, dropout=0)."""
    B, N, C = x.shape
    H = num_heads
    hd = C // H
    Cp = _round_up(C, LANE)

    # Keep >=2 grid steps when possible (two v7x TensorCores), otherwise fold
    # as many sequences per step as possible to amortize per-step overhead.
    steps = 2 if (B >= 2 and B % 2 == 0) else B
    bt = B // steps

    x_p = x if C == Cp else jnp.pad(x, ((0, 0), (0, 0), (0, Cp - C)))
    x_p = x_p.astype(jnp.bfloat16)

    if not enable_hcs:
        out_p = _fused_call(x_p, wqkv, wproj, bias,
                            num_heads=H, embed_dim=C, head_dim=hd, bt=bt)
        return out_p[:, :, :C].astype(x.dtype)

    # enable_hcs: the per-head (H, N-1, hd) attention output flattened
    # row-major IS the hcs permutation; no identity-projection kernel pass.
    o = _attn_call(x_p, wqkv, num_heads=H, embed_dim=C, head_dim=hd, bt=bt)
    o = o.reshape(B, H, N, hd)
    cls_tok = o[:, :, 0, :].reshape(B, 1, C).astype(x.dtype)   # raw head concat
    body = o[:, :, 1:, :].reshape(B, N - 1, C)                 # hcs layout, bf16
    if Cp > C:
        body = jnp.pad(body, ((0, 0), (0, 0), (0, Cp - C)))
    body_o = _proj_pallas(body.reshape(B * (N - 1), Cp), wproj, bias)
    body_o = body_o[:, :C].reshape(B, N - 1, C).astype(x.dtype)
    return jnp.concatenate([cls_tok, body_o], axis=1)


# --------------------------- pure-JAX reference ------------------------------ #

def reference_forward(x, w_qkv, w_proj, b_proj, *, num_heads, enable_hcs):
    B, N, C = x.shape
    hd = C // num_heads
    qkv = x @ w_qkv.T
    qkv = qkv.reshape(B, N, 3, num_heads, hd).transpose(2, 0, 3, 1, 4)
    q, k, v = qkv[0], qkv[1], qkv[2]
    attn = (q @ jnp.swapaxes(k, -2, -1)) * (1.0 / hd ** 0.5)
    attn = jax.nn.softmax(attn, axis=-1)
    xo = jnp.swapaxes(attn @ v, 1, 2).reshape(B, N, C)
    cls_tok, body = xo[:, 0:1], xo[:, 1:]
    if enable_hcs:
        body = body.reshape(B, N - 1, num_heads, hd)
        body = jnp.transpose(body, (0, 2, 1, 3)).reshape(B, N - 1, C)
    body = body @ w_proj.T + b_proj
    return jnp.concatenate([cls_tok, body], axis=1)


# ---------------------------------- main ------------------------------------ #

if __name__ == "__main__":
    B, N, embed_dim, num_heads = 2, 8, 32, 4

    key = jax.random.PRNGKey(0)
    kx, kqkv, kp, kb = jax.random.split(key, 4)

    x = jax.random.normal(kx, (B, N, embed_dim), dtype=jnp.float32)
    # torch nn.Linear weight shapes: (out_features, in_features). qkv_bias=False.
    w_qkv = 0.05 * jax.random.normal(kqkv, (3 * embed_dim, embed_dim), jnp.float32)
    w_proj = 0.05 * jax.random.normal(kp, (embed_dim, embed_dim), jnp.float32)
    b_proj = 0.05 * jax.random.normal(kb, (embed_dim,), jnp.float32)

    # One-time weight prep, hoisted out of the per-forward jitted path.
    params = prepare_mhsa_params(w_qkv, w_proj, b_proj, num_heads)
    params = jax.block_until_ready(params)

    ok = True
    for enable_hcs in (False, True):
        out = mhsa_forward(x, params["wqkv"], params["wproj"], params["bias"],
                           num_heads=num_heads, enable_hcs=enable_hcs)
        out = jax.block_until_ready(out)
        ref = reference_forward(
            x, w_qkv, w_proj, b_proj, num_heads=num_heads, enable_hcs=enable_hcs)
        # bf16 MXU inputs + approx reciprocal -> loosened tolerance vs f32 ref.
        ok = ok and bool(jnp.allclose(out, ref, rtol=2e-2, atol=2e-2))

    print("KERNEL_OK" if ok else "KERNEL_MISMATCH")
</pallas_src>

<mosaic_0001>
module attributes {stable_mosaic.version = 11 : i64} {
  func.func @_mhsa_fused_kernel(%arg0: i32, %arg1: memref<1x8x128xbf16, #tpu.memory_space<vmem>>, %arg2: memref<128x128xbf16, #tpu.memory_space<vmem>>, %arg3: memref<128x128xbf16, #tpu.memory_space<vmem>>, %arg4: memref<1x128xf32, #tpu.memory_space<vmem>>, %arg5: memref<1x8x128xf32, #tpu.memory_space<vmem>>) attributes {dimension_semantics = [#tpu.dimension_semantics<parallel>], iteration_bounds = array<i64: 2>, scalar_prefetch = 0 : i64, scratch_operands = 0 : i64, tpu.core_type = #tpu.core_type<tc>, window_params = [{transform_indices = @transform_0, window_bounds = array<i64: 1, 8, 128>}, {pipeline_mode = #tpu.pipeline_mode<synchronous>, transform_indices = @transform_1, window_bounds = array<i64: 128, 128>}, {pipeline_mode = #tpu.pipeline_mode<synchronous>, transform_indices = @transform_2, window_bounds = array<i64: 128, 128>}, {pipeline_mode = #tpu.pipeline_mode<synchronous>, transform_indices = @transform_3, window_bounds = array<i64: 1, 128>}, {transform_indices = @transform_4, window_bounds = array<i64: 1, 8, 128>}]} {
    %c0 = arith.constant 0 : index
    %c0_0 = arith.constant 0 : index
    %c0_1 = arith.constant 0 : index
    %0 = vector.load %arg1[%c0, %c0_0, %c0_1] : memref<1x8x128xbf16, #tpu.memory_space<vmem>>, vector<1x8x128xbf16>
    %1 = vector.shape_cast %0 : vector<1x8x128xbf16> to vector<8x128xbf16>
    %c0_2 = arith.constant 0 : index
    %c0_3 = arith.constant 0 : index
    %2 = vector.load %arg2[%c0_2, %c0_3] : memref<128x128xbf16, #tpu.memory_space<vmem>>, vector<128x128xbf16>
    %cst = arith.constant dense<0.000000e+00> : vector<8x128xf32>
    %3 = tpu.matmul %1, %2, %cst {dimension_numbers = #tpu.dot_dimension_numbers<[1], [0], [0], [1], [0, 0, 1, 1], [], []>} : vector<8x128xbf16>, vector<128x128xbf16>, vector<8x128xf32> -> vector<8x128xf32>
    %4 = arith.truncf %3 : vector<8x128xf32> to vector<8x128xbf16>
    %5 = vector.shape_cast %4 : vector<8x128xbf16> to vector<1x8x128xbf16>
    %6 = vector.shape_cast %5 : vector<1x8x128xbf16> to vector<8x128xbf16>
    %7 = vector.extract_strided_slice %6 {offsets = [0, 0], sizes = [8, 8], strides = [1, 1]} : vector<8x128xbf16> to vector<8x8xbf16>
    %8 = vector.extract_strided_slice %6 {offsets = [0, 32], sizes = [8, 8], strides = [1, 1]} : vector<8x128xbf16> to vector<8x8xbf16>
    %9 = vector.extract_strided_slice %6 {offsets = [0, 64], sizes = [8, 8], strides = [1, 1]} : vector<8x128xbf16> to vector<8x8xbf16>
    %10 = vector.extract_strided_slice %6 {offsets = [0, 8], sizes = [8, 8], strides = [1, 1]} : vector<8x128xbf16> to vector<8x8xbf16>
    %11 = vector.extract_strided_slice %6 {offsets = [0, 40], sizes = [8, 8], strides = [1, 1]} : vector<8x128xbf16> to vector<8x8xbf16>
    %12 = vector.extract_strided_slice %6 {offsets = [0, 72], sizes = [8, 8], strides = [1, 1]} : vector<8x128xbf16> to vector<8x8xbf16>
    %13 = vector.extract_strided_slice %6 {offsets = [0, 16], sizes = [8, 8], strides = [1, 1]} : vector<8x128xbf16> to vector<8x8xbf16>
    %14 = vector.extract_strided_slice %6 {offsets = [0, 48], sizes = [8, 8], strides = [1, 1]} : vector<8x128xbf16> to vector<8x8xbf16>
    %15 = vector.extract_strided_slice %6 {offsets = [0, 80], sizes = [8, 8], strides = [1, 1]} : vector<8x128xbf16> to vector<8x8xbf16>
    %16 = vector.extract_strided_slice %6 {offsets = [0, 24], sizes = [8, 8], strides = [1, 1]} : vector<8x128xbf16> to vector<8x8xbf16>
    %17 = vector.extract_strided_slice %6 {offsets = [0, 56], sizes = [8, 8], strides = [1, 1]} : vector<8x128xbf16> to vector<8x8xbf16>
    %18 = vector.extract_strided_slice %6 {offsets = [0, 88], sizes = [8, 8], strides = [1, 1]} : vector<8x128xbf16> to vector<8x8xbf16>
    %19 = vector.shape_cast %7 : vector<8x8xbf16> to vector<1x8x8xbf16>
    %20 = vector.shape_cast %10 : vector<8x8xbf16> to vector<1x8x8xbf16>
    %21 = vector.shape_cast %13 : vector<8x8xbf16> to vector<1x8x8xbf16>
    %22 = vector.shape_cast %16 : vector<8x8xbf16> to vector<1x8x8xbf16>
    %23 = tpu.concatenate %19, %20, %21, %22 in 0 : vector<1x8x8xbf16>, vector<1x8x8xbf16>, vector<1x8x8xbf16>, vector<1x8x8xbf16> -> vector<4x8x8xbf16>
    %24 = vector.shape_cast %8 : vector<8x8xbf16> to vector<1x8x8xbf16>
    %25 = vector.shape_cast %11 : vector<8x8xbf16> to vector<1x8x8xbf16>
    %26 = vector.shape_cast %14 : vector<8x8xbf16> to vector<1x8x8xbf16>
    %27 = vector.shape_cast %17 : vector<8x8xbf16> to vector<1x8x8xbf16>
    %28 = tpu.concatenate %24, %25, %26, %27 in 0 : vector<1x8x8xbf16>, vector<1x8x8xbf16>, vector<1x8x8xbf16>, vector<1x8x8xbf16> -> vector<4x8x8xbf16>
    %29 = vector.shape_cast %9 : vector<8x8xbf16> to vector<1x8x8xbf16>
    %30 = vector.shape_cast %12 : vector<8x8xbf16> to vector<1x8x8xbf16>
    %31 = vector.shape_cast %15 : vector<8x8xbf16> to vector<1x8x8xbf16>
    %32 = vector.shape_cast %18 : vector<8x8xbf16> to vector<1x8x8xbf16>
    %33 = tpu.concatenate %29, %30, %31, %32 in 0 : vector<1x8x8xbf16>, vector<1x8x8xbf16>, vector<1x8x8xbf16>, vector<1x8x8xbf16> -> vector<4x8x8xbf16>
    "tpu.trace_start"() <{level = 10 : i32, message = "gqd,gkd->gqk"}> : () -> ()
    %cst_4 = arith.constant dense<0.000000e+00> : vector<4x8x8xf32>
    %34 = tpu.matmul %23, %28, %cst_4 {dimension_numbers = #tpu.dot_dimension_numbers<[2], [2], [1], [1], [0, 0, 0, 1, 1, 1], [0], [0]>} : vector<4x8x8xbf16>, vector<4x8x8xbf16>, vector<4x8x8xf32> -> vector<4x8x8xf32>
    "tpu.trace_stop"() : () -> ()
    %cst_5 = arith.constant dense<0xFF800000> : vector<4x8xf32>
    %35 = vector.multi_reduction <maximumf>, %34, %cst_5 [2] : vector<4x8x8xf32> to vector<4x8xf32>
    %36 = vector.shape_cast %35 : vector<4x8xf32> to vector<4x8x1xf32>
    %37 = vector.broadcast %36 : vector<4x8x1xf32> to vector<4x8x8xf32>
    %38 = arith.subf %34, %37 : vector<4x8x8xf32>
    %39 = math.exp %38 : vector<4x8x8xf32>
    %cst_6 = arith.constant dense<0.000000e+00> : vector<4x8xf32>
    %40 = vector.multi_reduction <add>, %39, %cst_6 [2] : vector<4x8x8xf32> to vector<4x8xf32>
    %41 = vector.shape_cast %40 : vector<4x8xf32> to vector<4x8x1xf32>
    %42 = arith.truncf %39 : vector<4x8x8xf32> to vector<4x8x8xbf16>
    "tpu.trace_start"() <{level = 10 : i32, message = "gqk,gkd->gqd"}> : () -> ()
    %cst_7 = arith.constant dense<0.000000e+00> : vector<4x8x8xf32>
    %43 = tpu.matmul %42, %33, %cst_7 {dimension_numbers = #tpu.dot_dimension_numbers<[2], [1], [1], [2], [0, 0, 0, 1, 1, 2], [0], [0]>} : vector<4x8x8xbf16>, vector<4x8x8xbf16>, vector<4x8x8xf32> -> vector<4x8x8xf32>
    "tpu.trace_stop"() : () -> ()
    %44 = tpu.reciprocal %41 {approx = true} : vector<4x8x1xf32> -> vector<4x8x1xf32>
    %45 = vector.broadcast %44 : vector<4x8x1xf32> to vector<4x8x8xf32>
    %46 = arith.mulf %43, %45 : vector<4x8x8xf32>
    %47 = vector.extract_strided_slice %46 {offsets = [0, 0, 0], sizes = [1, 8, 8], strides = [1, 1, 1]} : vector<4x8x8xf32> to vector<1x8x8xf32>
    %48 = vector.shape_cast %47 : vector<1x8x8xf32> to vector<8x8xf32>
    %49 = vector.extract_strided_slice %46 {offsets = [1, 0, 0], sizes = [1, 8, 8], strides = [1, 1, 1]} : vector<4x8x8xf32> to vector<1x8x8xf32>
    %50 = vector.shape_cast %49 : vector<1x8x8xf32> to vector<8x8xf32>
    %51 = vector.extract_strided_slice %46 {offsets = [2, 0, 0], sizes = [1, 8, 8], strides = [1, 1, 1]} : vector<4x8x8xf32> to vector<1x8x8xf32>
    %52 = vector.shape_cast %51 : vector<1x8x8xf32> to vector<8x8xf32>
    %53 = vector.extract_strided_slice %46 {offsets = [3, 0, 0], sizes = [1, 8, 8], strides = [1, 1, 1]} : vector<4x8x8xf32> to vector<1x8x8xf32>
    %54 = vector.shape_cast %53 : vector<1x8x8xf32> to vector<8x8xf32>
    %55 = tpu.concatenate %48, %50, %52, %54 in 1 : vector<8x8xf32>, vector<8x8xf32>, vector<8x8xf32>, vector<8x8xf32> -> vector<8x32xf32>
    %cst_8 = arith.constant 0.000000e+00 : f32
    %56 = vector.broadcast %cst_8 : f32 to vector<8x96xf32>
    %57 = tpu.concatenate %55, %56 in 1 : vector<8x32xf32>, vector<8x96xf32> -> vector<8x128xf32>
    %58 = arith.truncf %57 : vector<8x128xf32> to vector<8x128xbf16>
    %c0_9 = arith.constant 0 : index
    %c0_10 = arith.constant 0 : index
    %59 = vector.load %arg3[%c0_9, %c0_10] : memref<128x128xbf16, #tpu.memory_space<vmem>>, vector<128x128xbf16>
    %cst_11 = arith.constant dense<0.000000e+00> : vector<8x128xf32>
    %60 = tpu.matmul %58, %59, %cst_11 {dimension_numbers = #tpu.dot_dimension_numbers<[1], [0], [0], [1], [0, 0, 1, 1], [], []>} : vector<8x128xbf16>, vector<128x128xbf16>, vector<8x128xf32> -> vector<8x128xf32>
    %c0_12 = arith.constant 0 : index
    %c0_13 = arith.constant 0 : index
    %61 = vector.load %arg4[%c0_12, %c0_13] : memref<1x128xf32, #tpu.memory_space<vmem>>, vector<1x128xf32>
    %62 = vector.broadcast %61 : vector<1x128xf32> to vector<8x128xf32>
    %63 = arith.addf %60, %62 : vector<8x128xf32>
    %64 = tpu.iota {dimensions = array<i32: 0>} : vector<8x128xi32>
    %c8_i32 = arith.constant 8 : i32
    %c0_i32 = arith.constant 0 : i32
    %65 = arith.cmpi eq, %c8_i32, %c0_i32 : i32
    %c1_i32 = arith.constant 1 : i32
    %66 = arith.select %65, %c1_i32, %c8_i32 : i32
    %67 = vector.broadcast %66 : i32 to vector<8x128xi32>
    %68 = arith.remsi %64, %67 : vector<8x128xi32>
    %c0_i32_14 = arith.constant 0 : i32
    %69 = vector.broadcast %c0_i32_14 : i32 to vector<8x128xi32>
    %70 = arith.cmpi ne, %68, %69 : vector<8x128xi32>
    %c0_i32_15 = arith.constant 0 : i32
    %71 = vector.broadcast %c0_i32_15 : i32 to vector<8x128xi32>
    %72 = arith.cmpi slt, %68, %71 : vector<8x128xi32>
    %c0_i32_16 = arith.constant 0 : i32
    %73 = arith.cmpi slt, %66, %c0_i32_16 : i32
    %74 = vector.broadcast %73 : i1 to vector<8x128xi1>
    %75 = vector.broadcast %74 : vector<8x128xi1> to vector<8x128xi1>
    %76 = arith.xori %72, %75 : vector<8x128xi1>
    %77 = arith.andi %76, %70 : vector<8x128xi1>
    %78 = vector.broadcast %66 : i32 to vector<8x128xi32>
    %79 = arith.addi %68, %78 : vector<8x128xi32>
    %80 = arith.select %77, %79, %68 : vector<8x128xi1>, vector<8x128xi32>
    %c0_i32_17 = arith.constant 0 : i32
    %81 = vector.broadcast %c0_i32_17 : i32 to vector<8x128xi32>
    %82 = arith.cmpi eq, %80, %81 : vector<8x128xi32>
    %83 = arith.select %82, %57, %63 : vector<8x128xi1>, vector<8x128xf32>
    %84 = vector.shape_cast %83 : vector<8x128xf32> to vector<1x8x128xf32>
    %c0_18 = arith.constant 0 : index
    %c0_19 = arith.constant 0 : index
    %c0_20 = arith.constant 0 : index
    %85 = vector.load %arg5[%c0_18, %c0_19, %c0_20] : memref<1x8x128xf32, #tpu.memory_space<vmem>>, vector<1x8x128xf32>
    tpu.vector_store %arg5[%c0_18, %c0_19, %c0_20], %84 {strides = array<i32>} : memref<1x8x128xf32, #tpu.memory_space<vmem>>, vector<1x8x128xf32>,
    return
  }
  func.func @transform_0(%arg0: i32) -> (i32, i32, i32) {
    %c0_i32 = arith.constant 0 : i32
    %c0_i32_0 = arith.constant 0 : i32
    %c0_i32_1 = arith.constant 0 : i32
    return %arg0, %c0_i32, %c0_i32_0 : i32, i32, i32
  }
  func.func @transform_1(%arg0: i32) -> (i32, i32) {
    %c0_i32 = arith.constant 0 : i32
    %c0_i32_0 = arith.constant 0 : i32
    %c0_i32_1 = arith.constant 0 : i32
    return %c0_i32, %c0_i32_0 : i32, i32
  }
  func.func @transform_2(%arg0: i32) -> (i32, i32) {
    %c0_i32 = arith.constant 0 : i32
    %c0_i32_0 = arith.constant 0 : i32
    %c0_i32_1 = arith.constant 0 : i32
    return %c0_i32, %c0_i32_0 : i32, i32
  }
  func.func @transform_3(%arg0: i32) -> (i32, i32) {
    %c0_i32 = arith.constant 0 : i32
    %c0_i32_0 = arith.constant 0 : i32
    %c0_i32_1 = arith.constant 0 : i32
    return %c0_i32, %c0_i32_0 : i32, i32
  }
  func.func @transform_4(%arg0: i32) -> (i32, i32, i32) {
    %c0_i32 = arith.constant 0 : i32
    %c0_i32_0 = arith.constant 0 : i32
    %c0_i32_1 = arith.constant 0 : i32
    return %arg0, %c0_i32, %c0_i32_0 : i32, i32, i32
  }
}

</mosaic_0001>

<llo_original>
// kernel: mhsa_forward.1
$region0: #{mhsa_forward.1}
  #allocation0 [shape = 'u32[]', space=smem, size = 0x4, offset = 0x4, fixed_abs, tag = 'smem constant byte address 0x4 - core index']
  #allocation1 [shape = 'u32[144,128]{1,0:T(1,128)}', space=vmem, size = 0x12000, scoped, tag = 'internal scratch']
  %s0 = inlined_call_operand.vmem [shape: bf16[2,8,128], index: 0, kind: input, shape index: {}]
  %s1 = inlined_call_operand.hbm [shape: bf16[128,128], index: 1, kind: input, shape index: {}]
  %s2 = inlined_call_operand.hbm [shape: bf16[128,128], index: 2, kind: input, shape index: {}]
  %s3 = inlined_call_operand.vmem [shape: f32[1,128], index: 3, kind: input, shape index: {}]
  %s4 = inlined_call_operand.hbm [shape: f32[2,8,128], index: 4, kind: output, shape index: {}]
  %s5 = sld [smem:[#allocation0]]
  $region57: #{mhsa_forward.1} parent=0
    _
  %s7 = ssub.s32 1, %s5
  %s8 = scalar_select 0, %s7, %s5
  $region1: #{mhsa_forward.1} parent=0
    #allocation2 [shape = 'u8[32768]{0}', space=vmem, size = 0x8000, scoped, tag = 'input window, operand 1, single buffered']
    #allocation3 [shape = 's32[2]{0}', space=sflag, size = 0x8, scoped, tag = 'scoped memory for mhsa_forward.1']
    #allocation4 [shape = 's32[2]{0}', space=sflag, size = 0x8, scoped, tag = 'scoped memory for mhsa_forward.1']
    #allocation5 [shape = 'u8[32768]{0}', space=vmem, size = 0x8000, scoped, tag = 'input window, operand 2, single buffered']
    #allocation6 [shape = 's32[1]{0}', space=sflag, size = 0x4, scoped, tag = 'scoped memory for mhsa_forward.1']
    #allocation7 [shape = 'u8[8192]{0}', space=vmem, size = 0x2000, scoped, tag = 'output window, operand 0']
    %9 = vsyncpa [#allocation3], 0
    %10 = vsyncpa [#allocation6], 0
    %11 = vsyncpa [#allocation4], 0
    %s12 = scalar_lea.sflag [#allocation4], 1
    %13 = vsyncpa %s12, 0
    loop: start=0, step=1, limit=4
    $region2: #{mhsa_forward.1} parent=1 // loop_pre_header
      _
    $region3: #{mhsa_forward.1} parent=1 // loop_header
      %s15 = sphi 0, %s19
      %p16 = scmp.ge.s32.totalorder %s15, 4
      %s25 = sphi 0, %s27
      %s28 = sphi 0, %s25
      %s29 = sphi 0, %s28
      %s45 = sphi 0, %s29
      %s49 = sphi 0, %s49
      %s51 = sphi 0, %s49
      %s52 = sphi 0, %s51
      %s66 = sphi 0, %s52
      %s70 = sphi 0, %s70
      %s72 = sphi 0, %s70
      %s73 = sphi 0, %s72
      %s87 = sphi 0, %s73
      %s91 = sphi 0, %s91
      %s93 = sphi 0, %s91
      %s94 = sphi 0, %s93
      %s108 = sphi 0, %s94
      %s114 = sphi 0, %s116
      %s117 = sphi 0, %s114
      %s118 = sphi 0, %s117
      %s134 = sphi 0, %s118
    $region4: #{mhsa_forward.1} parent=1 // loop_header_branch
      %18 = sbr.rel (%p16) target = $region8
    $region5: #{mhsa_forward.1} parent=1 // loop_body
      %s20 = ssub.s32 %s15, 1
      %s21 = ssub.s32 %s15, 2
      %s22 = sadd.s32 %s15, 1
      %s23 = ssub.s32 %s15, %s22
      %p24 = scmp.eq.s32.totalorder %s23, 0
      %s26 = sadd.s32 %s25, 1
      %s27 = scalar_select %p24, %s25, %s26
      %p30 = pneg %p24
      %p31 = scmp.eq.s32.totalorder %s15, 1
      %p32 = por %p30, %p31
      %p33 = scmp.ne.s32.totalorder %s25, %s28
      %p34 = scmp.eq.s32.totalorder %s15, 0
      %p35 = por %p33, %p34
      %p36 = scmp.ne.s32.totalorder %s25, %s28
      %p37 = scmp.eq.s32.totalorder %s20, 1
      %p38 = por %p36, %p37
      %p39 = scmp.ne.s32.totalorder %s28, %s29
      %p40 = scmp.eq.s32.totalorder %s20, 0
      %p41 = por %p39, %p40
      %p42 = scmp.ne.s32.totalorder %s28, %s29
      %p43 = scmp.eq.s32.totalorder %s21, 1
      %p44 = por %p42, %p43
      %p46 = scmp.ne.s32.totalorder %s29, %s45
      %p47 = scmp.eq.s32.totalorder %s21, 0
      %p48 = por %p46, %p47
      %s50 = sadd.s32 %s49, 1
      %p53 = scmp.eq.s32.totalorder %s15, 1
      %p54 = scmp.ne.s32.totalorder %s49, %s51
      %p55 = scmp.eq.s32.totalorder %s15, 0
      %p56 = por %p54, %p55
      %p57 = scmp.ne.s32.totalorder %s49, %s51
      %p58 = scmp.eq.s32.totalorder %s20, 1
      %p59 = por %p57, %p58
      %p60 = scmp.ne.s32.totalorder %s51, %s52
      %p61 = scmp.eq.s32.totalorder %s20, 0
      %p62 = por %p60, %p61
      %p63 = scmp.ne.s32.totalorder %s51, %s52
      %p64 = scmp.eq.s32.totalorder %s21, 1
      %p65 = por %p63, %p64
      %p67 = scmp.ne.s32.totalorder %s52, %s66
      %p68 = scmp.eq.s32.totalorder %s21, 0
      %p69 = por %p67, %p68
      %s71 = sadd.s32 %s70, 1
      %p74 = scmp.eq.s32.totalorder %s15, 1
      %p75 = scmp.ne.s32.totalorder %s70, %s72
      %p76 = scmp.eq.s32.totalorder %s15, 0
      %p77 = por %p75, %p76
      %p78 = scmp.ne.s32.totalorder %s70, %s72
      %p79 = scmp.eq.s32.totalorder %s20, 1
      %p80 = por %p78, %p79
      %p81 = scmp.ne.s32.totalorder %s72, %s73
      %p82 = scmp.eq.s32.totalorder %s20, 0
      %p83 = por %p81, %p82
      %p84 = scmp.ne.s32.totalorder %s72, %s73
      %p85 = scmp.eq.s32.totalorder %s21, 1
      %p86 = por %p84, %p85
      %p88 = scmp.ne.s32.totalorder %s73, %s87
      %p89 = scmp.eq.s32.totalorder %s21, 0
      %p90 = por %p88, %p89
      %s92 = sadd.s32 %s91, 1
      %p95 = scmp.eq.s32.totalorder %s15, 1
      %p96 = scmp.ne.s32.totalorder %s91, %s93
      %p97 = scmp.eq.s32.totalorder %s15, 0
      %p98 = por %p96, %p97
      %p99 = scmp.ne.s32.totalorder %s91, %s93
      %p100 = scmp.eq.s32.totalorder %s20, 1
      %p101 = por %p99, %p100
      %p102 = scmp.ne.s32.totalorder %s93, %s94
      %p103 = scmp.eq.s32.totalorder %s20, 0
      %p104 = por %p102, %p103
      %p105 = scmp.ne.s32.totalorder %s93, %s94
      %p106 = scmp.eq.s32.totalorder %s21, 1
      %p107 = por %p105, %p106
      %p109 = scmp.ne.s32.totalorder %s94, %s108
      %p110 = scmp.eq.s32.totalorder %s21, 0
      %p111 = por %p109, %p110
      %s112 = ssub.s32 %s15, %s22
      %p113 = scmp.eq.s32.totalorder %s112, 0
      %s115 = sadd.s32 %s114, 1
      %s116 = scalar_select %p113, %s114, %s115
      %p119 = pneg %p113
      %p120 = scmp.eq.s32.totalorder %s15, 1
      %p121 = por %p119, %p120
      %p122 = scmp.ne.s32.totalorder %s114, %s117
      %p123 = scmp.eq.s32.totalorder %s15, 0
      %p124 = por %p122, %p123
      %p125 = scmp.ne.s32.totalorder %s114, %s117
      %p126 = scmp.eq.s32.totalorder %s20, 1
      %p127 = por %p125, %p126
      %p128 = scmp.ne.s32.totalorder %s117, %s118
      %p129 = scmp.eq.s32.totalorder %s20, 0
      %p130 = por %p128, %p129
      %p131 = scmp.ne.s32.totalorder %s117, %s118
      %p132 = scmp.eq.s32.totalorder %s21, 1
      %p133 = por %p131, %p132
      %p135 = scmp.ne.s32.totalorder %s118, %s134
      %p136 = scmp.eq.s32.totalorder %s21, 0
      %p137 = por %p135, %p136
      %p138 = scmp.le.s32.totalorder 1, %s15
      %p139 = scmp.lt.s32.totalorder %s15, 3
      %p140 = pnand %p138, %p139
      %p141 = pneg %p140
      // Predicated region
      $region9: #{mhsa_forward.1} parent=5 // pred_check
        _
      $region10: #{mhsa_forward.1} parent=5 // pred_check_branch
        %143 = sbr.rel (%p140) target = $region12
      $region11: #{mhsa_forward.1} parent=5 // pred_region
        %s144 = ssub.s32 %s15, 1
        // Predicated region
        $region13: #{mhsa_forward.1} parent=11 // pred_check
          %p145 = pneg %p62
        $region14: #{mhsa_forward.1} parent=11 // pred_check_branch
          %147 = sbr.rel (%p145) target = $region16
        $region15: #{mhsa_forward.1} parent=11 // pred_region
          %s149 = ssub.s32 1024, 1024
          %150 = vsyncadd [#allocation3], %s149
          %s151 = sshll.u32 [#allocation2], 4
          %s152 = int_to_ptr.vmem [resolvable:$true] %s151
          %157 = dma.hbm_to_vmem [thread:$0]  %s1, 1024, %s152, [#allocation3], 64, 64, 4
        $region16: #{mhsa_forward.1} parent=11 // pred_fallthru
          _
        // Predicated region
        $region17: #{mhsa_forward.1} parent=11 // pred_check
          %p158 = pneg %p83
        $region18: #{mhsa_forward.1} parent=11 // pred_check_branch
          %160 = sbr.rel (%p158) target = $region20
        $region19: #{mhsa_forward.1} parent=11 // pred_region
          %s162 = ssub.s32 1024, 1024
          %163 = vsyncadd [#allocation6], %s162
          %s164 = sshll.u32 [#allocation5], 4
          %s165 = int_to_ptr.vmem [resolvable:$true] %s164
          %170 = dma.hbm_to_vmem [thread:$0]  %s2, 1024, %s165, [#allocation6], 64, 64, 4
        $region20: #{mhsa_forward.1} parent=11 // pred_fallthru
          _
        // Predicated region
        $region21: #{mhsa_forward.1} parent=11 // pred_check
          %p171 = pneg %p104
        $region22: #{mhsa_forward.1} parent=11 // pred_check_branch
          %173 = sbr.rel (%p171) target = $region24
        $region23: #{mhsa_forward.1} parent=11 // pred_region
          _
        $region24: #{mhsa_forward.1} parent=11 // pred_fallthru
          _
      $region12: #{mhsa_forward.1} parent=5 // pred_fallthru
        _
      %p174 = scmp.lt.s32.totalorder %s15, 2
      // Predicated region
      $region25: #{mhsa_forward.1} parent=5 // pred_check
        %p175 = pneg %p174
      $region26: #{mhsa_forward.1} parent=5 // pred_check_branch
        %177 = sbr.rel (%p175) target = $region28
      $region27: #{mhsa_forward.1} parent=5 // pred_region
        // Predicated region
        $region29: #{mhsa_forward.1} parent=27 // pred_check
          %p178 = pneg %p35
        $region30: #{mhsa_forward.1} parent=27 // pred_check_branch
          %180 = sbr.rel (%p178) target = $region32
        $region31: #{mhsa_forward.1} parent=27 // pred_region
          %p181 = scmp.lt.s32.totalorder %s15, 1
          %s182 = scalar_select %p181, %s15, 1
          %s183 = smul.addr %s182, 4
          %s184 = scalar_lea.vmem %s0, %s183
        $region32: #{mhsa_forward.1} parent=27 // pred_fallthru
          _
      $region28: #{mhsa_forward.1} parent=5 // pred_fallthru
        _
      %p185 = scmp.le.s32.totalorder 1, %s15
      %p186 = scmp.lt.s32.totalorder %s15, 3
      %p187 = pnand %p185, %p186
      %p188 = pneg %p187
      // Predicated region
      $region33: #{mhsa_forward.1} parent=5 // pred_check
        _
      $region34: #{mhsa_forward.1} parent=5 // pred_check_branch
        %190 = sbr.rel (%p187) target = $region36
      $region35: #{mhsa_forward.1} parent=5 // pred_region
        %s191 = ssub.s32 %s15, 1
        // Predicated region
        $region37: #{mhsa_forward.1} parent=35 // pred_check
          %p192 = pneg %p62
        $region38: #{mhsa_forward.1} parent=35 // pred_check_branch
          %194 = sbr.rel (%p192) target = $region40
        $region39: #{mhsa_forward.1} parent=35 // pred_region
          %195 = dma.done [#allocation3], 1024
        $region40: #{mhsa_forward.1} parent=35 // pred_fallthru
          _
        // Predicated region
        $region41: #{mhsa_forward.1} parent=35 // pred_check
          %p196 = pneg %p83
        $region42: #{mhsa_forward.1} parent=35 // pred_check_branch
          %198 = sbr.rel (%p196) target = $region44
        $region43: #{mhsa_forward.1} parent=35 // pred_region
          %199 = dma.done [#allocation6], 1024
        $region44: #{mhsa_forward.1} parent=35 // pred_fallthru
          _
        %p200 = scmp.lt.s32.totalorder %s20, 1
        %s201 = scalar_select %p200, %s20, 1
        %s202 = smul.addr %s201, 4
        %s203 = scalar_lea.vmem %s0, %s202
        %p204 = pneg %p41
        %p205 = pneg %p38
        %p206 = pneg %p62
        %p207 = pneg %p59
        %p208 = pneg %p83
        %p209 = pneg %p80
        %p210 = pneg %p104
        %p211 = pneg %p101
        %p212 = pneg %p130
        %p213 = pneg %p127
        %s214 = sand.u32 %s117, 1
        %s215 = scalar_lea.sflag [#allocation4], %s214
        %s216 = sand.u32 %s117, 1
        %s217 = smul.addr %s216, 8
        %s218 = scalar_lea.vmem [#allocation7], %s217
        %p219 = scmp.lt.s32.totalorder %s20, 1
        %s220 = scalar_select %p219, %s20, 1
        %s221 = smul.addr %s220, 4
        %s222 = scalar_lea.vmem %s0, %s221
        %v224 = vld [vmem:[%s222] sm:$0xf]
        %v225 = vld [vmem:[#allocation2] sm:$0xf]
        %v226 = vld [vmem:[#allocation2 + $0x4] sm:$0xf]
        %v227 = vld [vmem:[#allocation2 + $0x8] sm:$0xf]
        %v228 = vld [vmem:[#allocation2 + $0xc] sm:$0xf]
        %v229 = vld [vmem:[#allocation2 + $0x10] sm:$0xf]
        %v230 = vld [vmem:[#allocation2 + $0x14] sm:$0xf]
        %v231 = vld [vmem:[#allocation2 + $0x18] sm:$0xf]
        %v232 = vld [vmem:[#allocation2 + $0x1c] sm:$0xf]
        %v233 = vld [vmem:[#allocation2 + $0x20] sm:$0xf]
        %v234 = vld [vmem:[#allocation2 + $0x24] sm:$0xf]
        %v235 = vld [vmem:[#allocation2 + $0x28] sm:$0xf]
        %v236 = vld [vmem:[#allocation2 + $0x2c] sm:$0xf]
        %v237 = vld [vmem:[#allocation2 + $0x30] sm:$0xf]
        %v238 = vld [vmem:[#allocation2 + $0x34] sm:$0xf]
        %v239 = vld [vmem:[#allocation2 + $0x38] sm:$0xf]
        %v240 = vld [vmem:[#allocation2 + $0x3c] sm:$0xf]
        %v257 = vunpack.c.l.b16 %v225
        %v258 = vunpack.c.l.b16 %v226
        %v259 = vunpack.c.l.b16 %v227
        %v260 = vunpack.c.l.b16 %v228
        %v261 = vunpack.c.l.b16 %v229
        %v262 = vunpack.c.l.b16 %v230
        %v263 = vunpack.c.l.b16 %v231
        %v264 = vunpack.c.l.b16 %v232
        %v265 = vunpack.c.l.b16 %v233
        %v266 = vunpack.c.l.b16 %v234
        %v267 = vunpack.c.l.b16 %v235
        %v268 = vunpack.c.l.b16 %v236
        %v269 = vunpack.c.l.b16 %v237
        %v270 = vunpack.c.l.b16 %v238
        %v271 = vunpack.c.l.b16 %v239
        %v272 = vunpack.c.l.b16 %v240
        %v273 = vpack.c.b16 %v258, %v257
        %v274 = vpack.c.b16 %v260, %v259
        %v275 = vpack.c.b16 %v262, %v261
        %v276 = vpack.c.b16 %v264, %v263
        %v277 = vpack.c.b16 %v266, %v265
        %v278 = vpack.c.b16 %v268, %v267
        %v279 = vpack.c.b16 %v270, %v269
        %v280 = vpack.c.b16 %v272, %v271
        %289 = vmatprep.subr.bf16.mxu0 0
        %290 = vmatpush1.bf16.msra.mxu0 %v273
        %291 = vmatprep.subr.bf16.mxu0 0
        %292 = vmatpush1.bf16.msra.mxu0 %v274
        %293 = vmatprep.subr.bf16.mxu0 0
        %294 = vmatpush1.bf16.msra.mxu0 %v275
        %295 = vmatprep.subr.bf16.mxu0 0
        %296 = vmatpush1.bf16.msra.mxu0 %v276
        %297 = vmatprep.subr.bf16.mxu0 0
        %298 = vmatpush1.bf16.msra.mxu0 %v277
        %299 = vmatprep.subr.bf16.mxu0 0
        %300 = vmatpush1.bf16.msra.mxu0 %v278
        %301 = vmatprep.subr.bf16.mxu0 0
        %302 = vmatpush1.bf16.msra.mxu0 %v279
        %303 = vmatprep.subr.bf16.mxu0 0
        %304 = vmatpush1.bf16.msra.mxu0 %v280
        %305 = vmatprep.subr.bf16.mxu0 0
        %306 = vmatpush1.bf16.msra.mxu0 0
        %307 = vmatprep.subr.bf16.mxu0 0
        %308 = vmatpush1.bf16.msra.mxu0 0
        %309 = vmatprep.subr.bf16.mxu0 0
        %310 = vmatpush1.bf16.msra.mxu0 0
        %311 = vmatprep.subr.bf16.mxu0 0
        %312 = vmatpush1.bf16.msra.mxu0 0
        %313 = vmatprep.subr.bf16.mxu0 0
        %314 = vmatpush1.bf16.msra.mxu0 0
        %315 = vmatprep.subr.bf16.mxu0 0
        %316 = vmatpush1.bf16.msra.mxu0 0
        %317 = vmatprep.subr.bf16.mxu0 0
        %318 = vmatpush1.bf16.msra.mxu0 0
        %319 = vmatprep.subr.bf16.mxu0 0
        %320 = vmatpush1.bf16.msra.mxu0 0
        %321 = vmatprep.mubr.bf16.mxu0 0
        %322 = vmatmul.mubr.bf16.gmra.mrb[0].mxu0 %v224
        %v323 = vpop.f32.mrb[0].mxu0
        %v324 = vadd.f32 0.0, %v323
        %v325 = vpop.f32.mrb[0].mxu0
        %v326 = vpop.f32.mrb[0].mxu0
        %v327 = vpop.f32.mrb[0].mxu0
        %328 = vdwg.mxu0
        %v329 = vpack.c.bf16 %v324, %v324
        %331 = vrot.lane.b32.xlu0 %v329, 120
        %v332 = vpop.permute.xlu0 %331
        %333 = vrot.lane.b32.xlu0 %v329, 112
        %v334 = vpop.permute.xlu0 %333
        %335 = vrot.lane.b32.xlu0 %v329, 104
        %v336 = vpop.permute.xlu0 %335
        %337 = vrot.lane.b32.xlu0 %v329, 96
        %v338 = vpop.permute.xlu0 %337
        %vm339 = vcmask 64512
        %v341 = vsel %vm339, %v329, 0
        %v344 = vsel %vm339, %v338, 0
        %346 = vmatprep.subr.bf16.mxu0 0
        %347 = vmatpush1.bf16.xpose.msra.mxu0 %v344
        %348 = vmatprep.subr.bf16.mxu0 0
        %349 = vmatpush1.bf16.xpose.msra.mxu0 0
        %350 = vmatprep.subr.bf16.mxu0 0
        %351 = vmatpush1.bf16.xpose.msra.mxu0 0
        %352 = vmatprep.subr.bf16.mxu0 0
        %353 = vmatpush1.bf16.xpose.msra.mxu0 0
        %354 = vmatprep.subr.bf16.mxu0 0
        %355 = vmatpush1.bf16.xpose.msra.mxu0 0
        %356 = vmatprep.subr.bf16.mxu0 0
        %357 = vmatpush1.bf16.xpose.msra.mxu0 0
        %358 = vmatprep.subr.bf16.mxu0 0
        %359 = vmatpush1.bf16.xpose.msra.mxu0 0
        %360 = vmatprep.subr.bf16.mxu0 0
        %361 = vmatpush1.bf16.xpose.msra.mxu0 0
        %362 = vmatprep.subr.bf16.mxu0 0
        %363 = vmatpush1.bf16.xpose.msra.mxu0 0
        %364 = vmatprep.subr.bf16.mxu0 0
        %365 = vmatpush1.bf16.xpose.msra.mxu0 0
        %366 = vmatprep.subr.bf16.mxu0 0
        %367 = vmatpush1.bf16.xpose.msra.mxu0 0
        %368 = vmatprep.subr.bf16.mxu0 0
        %369 = vmatpush1.bf16.xpose.msra.mxu0 0
        %370 = vmatprep.subr.bf16.mxu0 0
        %371 = vmatpush1.bf16.xpose.msra.mxu0 0
        %372 = vmatprep.subr.bf16.mxu0 0
        %373 = vmatpush1.bf16.xpose.msra.mxu0 0
        %374 = vmatprep.subr.bf16.mxu0 0
        %375 = vmatpush1.bf16.xpose.msra.mxu0 0
        %376 = vmatprep.subr.bf16.mxu0 0
        %377 = vmatpush1.bf16.xpose.msra.mxu0 0
        %378 = vmatprep.mubr.bf16.mxu0 0
        %379 = vmatmul.mubr.bf16.gmra.mrb[0].mxu0 %v341
        %v380 = vpop.f32.mrb[0].mxu0
        %v381 = vadd.f32 0.0, %v380
        %v382 = vpop.f32.mrb[0].mxu0
        %v383 = vpop.f32.mrb[0].mxu0
        %v384 = vpop.f32.mrb[0].mxu0
        %385 = vdwg.mxu0
        %386 = vrot.lane.b32.xlu0 %v332, 96
        %v387 = vpop.permute.xlu0 %386
        %v389 = vsel %vm339, %v332, 0
        %v392 = vsel %vm339, %v387, 0
        %394 = vmatprep.subr.bf16.mxu0 0
        %395 = vmatpush1.bf16.xpose.msra.mxu0 %v392
        %396 = vmatprep.subr.bf16.mxu0 0
        %397 = vmatpush1.bf16.xpose.msra.mxu0 0
        %398 = vmatprep.subr.bf16.mxu0 0
        %399 = vmatpush1.bf16.xpose.msra.mxu0 0
        %400 = vmatprep.subr.bf16.mxu0 0
        %401 = vmatpush1.bf16.xpose.msra.mxu0 0
        %402 = vmatprep.subr.bf16.mxu0 0
        %403 = vmatpush1.bf16.xpose.msra.mxu0 0
        %404 = vmatprep.subr.bf16.mxu0 0
        %405 = vmatpush1.bf16.xpose.msra.mxu0 0
        %406 = vmatprep.subr.bf16.mxu0 0
        %407 = vmatpush1.bf16.xpose.msra.mxu0 0
        %408 = vmatprep.subr.bf16.mxu0 0
        %409 = vmatpush1.bf16.xpose.msra.mxu0 0
        %410 = vmatprep.subr.bf16.mxu0 0
        %411 = vmatpush1.bf16.xpose.msra.mxu0 0
        %412 = vmatprep.subr.bf16.mxu0 0
        %413 = vmatpush1.bf16.xpose.msra.mxu0 0
        %414 = vmatprep.subr.bf16.mxu0 0
        %415 = vmatpush1.bf16.xpose.msra.mxu0 0
        %416 = vmatprep.subr.bf16.mxu0 0
        %417 = vmatpush1.bf16.xpose.msra.mxu0 0
        %418 = vmatprep.subr.bf16.mxu0 0
        %419 = vmatpush1.bf16.xpose.msra.mxu0 0
        %420 = vmatprep.subr.bf16.mxu0 0
        %421 = vmatpush1.bf16.xpose.msra.mxu0 0
        %422 = vmatprep.subr.bf16.mxu0 0
        %423 = vmatpush1.bf16.xpose.msra.mxu0 0
        %424 = vmatprep.subr.bf16.mxu0 0
        %425 = vmatpush1.bf16.xpose.msra.mxu0 0
        %426 = vmatprep.mubr.bf16.mxu0 0
        %427 = vmatmul.mubr.bf16.gmra.mrb[0].mxu0 %v389
        %v428 = vpop.f32.mrb[0].mxu0
        %v429 = vadd.f32 0.0, %v428
        %v430 = vpop.f32.mrb[0].mxu0
        %v431 = vpop.f32.mrb[0].mxu0
        %v432 = vpop.f32.mrb[0].mxu0
        %433 = vdwg.mxu0
        %434 = vrot.lane.b32.xlu0 %v334, 96
        %v435 = vpop.permute.xlu0 %434
        %v437 = vsel %vm339, %v334, 0
        %v440 = vsel %vm339, %v435, 0
        %442 = vmatprep.subr.bf16.mxu0 0
        %443 = vmatpush1.bf16.xpose.msra.mxu0 %v440
        %444 = vmatprep.subr.bf16.mxu0 0
        %445 = vmatpush1.bf16.xpose.msra.mxu0 0
        %446 = vmatprep.subr.bf16.mxu0 0
        %447 = vmatpush1.bf16.xpose.msra.mxu0 0
        %448 = vmatprep.subr.bf16.mxu0 0
        %449 = vmatpush1.bf16.xpose.msra.mxu0 0
        %450 = vmatprep.subr.bf16.mxu0 0
        %451 = vmatpush1.bf16.xpose.msra.mxu0 0
        %452 = vmatprep.subr.bf16.mxu0 0
        %453 = vmatpush1.bf16.xpose.msra.mxu0 0
        %454 = vmatprep.subr.bf16.mxu0 0
        %455 = vmatpush1.bf16.xpose.msra.mxu0 0
        %456 = vmatprep.subr.bf16.mxu0 0
        %457 = vmatpush1.bf16.xpose.msra.mxu0 0
        %458 = vmatprep.subr.bf16.mxu0 0
        %459 = vmatpush1.bf16.xpose.msra.mxu0 0
        %460 = vmatprep.subr.bf16.mxu0 0
        %461 = vmatpush1.bf16.xpose.msra.mxu0 0
        %462 = vmatprep.subr.bf16.mxu0 0
        %463 = vmatpush1.bf16.xpose.msra.mxu0 0
        %464 = vmatprep.subr.bf16.mxu0 0
        %465 = vmatpush1.bf16.xpose.msra.mxu0 0
        %466 = vmatprep.subr.bf16.mxu0 0
        %467 = vmatpush1.bf16.xpose.msra.mxu0 0
        %468 = vmatprep.subr.bf16.mxu0 0
        %469 = vmatpush1.bf16.xpose.msra.mxu0 0
        %470 = vmatprep.subr.bf16.mxu0 0
        %471 = vmatpush1.bf16.xpose.msra.mxu0 0
        %472 = vmatprep.subr.bf16.mxu0 0
        %473 = vmatpush1.bf16.xpose.msra.mxu0 0
        %474 = vmatprep.mubr.bf16.mxu0 0
        %475 = vmatmul.mubr.bf16.gmra.mrb[0].mxu0 %v437
        %v476 = vpop.f32.mrb[0].mxu0
        %v477 = vadd.f32 0.0, %v476
        %v478 = vpop.f32.mrb[0].mxu0
        %v479 = vpop.f32.mrb[0].mxu0
        %v480 = vpop.f32.mrb[0].mxu0
        %481 = vdwg.mxu0
        %482 = vrot.lane.b32.xlu0 %v336, 96
        %v483 = vpop.permute.xlu0 %482
        %v485 = vsel %vm339, %v336, 0
        %v488 = vsel %vm339, %v483, 0
        %490 = vmatprep.subr.bf16.mxu0 0
        %491 = vmatpush1.bf16.xpose.msra.mxu0 %v488
        %492 = vmatprep.subr.bf16.mxu0 0
        %493 = vmatpush1.bf16.xpose.msra.mxu0 0
        %494 = vmatprep.subr.bf16.mxu0 0
        %495 = vmatpush1.bf16.xpose.msra.mxu0 0
        %496 = vmatprep.subr.bf16.mxu0 0
        %497 = vmatpush1.bf16.xpose.msra.mxu0 0
        %498 = vmatprep.subr.bf16.mxu0 0
        %499 = vmatpush1.bf16.xpose.msra.mxu0 0
        %500 = vmatprep.subr.bf16.mxu0 0
        %501 = vmatpush1.bf16.xpose.msra.mxu0 0
        %502 = vmatprep.subr.bf16.mxu0 0
        %503 = vmatpush1.bf16.xpose.msra.mxu0 0
        %504 = vmatprep.subr.bf16.mxu0 0
        %505 = vmatpush1.bf16.xpose.msra.mxu0 0
        %506 = vmatprep.subr.bf16.mxu0 0
        %507 = vmatpush1.bf16.xpose.msra.mxu0 0
        %508 = vmatprep.subr.bf16.mxu0 0
        %509 = vmatpush1.bf16.xpose.msra.mxu0 0
        %510 = vmatprep.subr.bf16.mxu0 0
        %511 = vmatpush1.bf16.xpose.msra.mxu0 0
        %512 = vmatprep.subr.bf16.mxu0 0
        %513 = vmatpush1.bf16.xpose.msra.mxu0 0
        %514 = vmatprep.subr.bf16.mxu0 0
        %515 = vmatpush1.bf16.xpose.msra.mxu0 0
        %516 = vmatprep.subr.bf16.mxu0 0
        %517 = vmatpush1.bf16.xpose.msra.mxu0 0
        %518 = vmatprep.subr.bf16.mxu0 0
        %519 = vmatpush1.bf16.xpose.msra.mxu0 0
        %520 = vmatprep.subr.bf16.mxu0 0
        %521 = vmatpush1.bf16.xpose.msra.mxu0 0
        %522 = vmatprep.mubr.bf16.mxu0 0
        %523 = vmatmul.mubr.bf16.gmra.mrb[0].mxu0 %v485
        %v524 = vpop.f32.mrb[0].mxu0
        %v525 = vadd.f32 0.0, %v524
        %v526 = vpop.f32.mrb[0].mxu0
        %v527 = vpop.f32.mrb[0].mxu0
        %v528 = vpop.f32.mrb[0].mxu0
        %529 = vdwg.mxu0
        %v530 = vsel %vm339, %v381, -inf
        %531 = vmax.xlane.f32.xlu0 %v530
        %v532 = vpop.xlane.xlu0 %531
        %v533 = vsel %vm339, %v429, -inf
        %534 = vmax.xlane.f32.xlu0 %v533
        %v535 = vpop.xlane.xlu0 %534
        %v536 = vsel %vm339, %v477, -inf
        %537 = vmax.xlane.f32.xlu0 %v536
        %v538 = vpop.xlane.xlu0 %537
        %v539 = vsel %vm339, %v525, -inf
        %540 = vmax.xlane.f32.xlu0 %v539
        %v541 = vpop.xlane.xlu0 %540
        %v542 = vsub.f32 %v381, %v532
        %v543 = vsub.f32 %v429, %v535
        %v544 = vsub.f32 %v477, %v538
        %v545 = vsub.f32 %v525, %v541
        %v546 = vmul.f32 %v542, 1.442695
        %v547 = vpow.pop %v546
        %v548 = vmul.f32 %v543, 1.442695
        %v549 = vpow.pop %v548
        %v550 = vmul.f32 %v544, 1.442695
        %v551 = vpow.pop %v550
        %v552 = vmul.f32 %v545, 1.442695
        %v553 = vpow.pop %v552
        %v554 = vsel %vm339, %v547, 0.0
        %555 = vadd.xlane.f32.xlu0 %v554
        %v556 = vpop.xlane.xlu0 %555
        %v557 = vsel %vm339, %v549, 0.0
        %558 = vadd.xlane.f32.xlu0 %v557
        %v559 = vpop.xlane.xlu0 %558
        %v560 = vsel %vm339, %v551, 0.0
        %561 = vadd.xlane.f32.xlu0 %v560
        %v562 = vpop.xlane.xlu0 %561
        %v563 = vsel %vm339, %v553, 0.0
        %564 = vadd.xlane.f32.xlu0 %v563
        %v565 = vpop.xlane.xlu0 %564
        %v566 = vpack.c.bf16 %v547, %v547
        %v567 = vpack.c.bf16 %v549, %v549
        %v568 = vpack.c.bf16 %v551, %v551
        %v569 = vpack.c.bf16 %v553, %v553
        %570 = vrot.lane.b32.xlu0 %v329, 64
        %v571 = vpop.permute.xlu0 %570
        %v573 = vsel %vm339, %v566, 0
        %vm575 = vcmask 1043456
        %v577 = vsel %vm575, %v571, 0
        %579 = vmatprep.subr.bf16.mxu0 0
        %580 = vmatpush1.bf16.msra.mxu0 %v577
        %581 = vmatprep.subr.bf16.mxu0 0
        %582 = vmatpush1.bf16.msra.mxu0 0
        %583 = vmatprep.subr.bf16.mxu0 0
        %584 = vmatpush1.bf16.msra.mxu0 0
        %585 = vmatprep.subr.bf16.mxu0 0
        %586 = vmatpush1.bf16.msra.mxu0 0
        %587 = vmatprep.subr.bf16.mxu0 0
        %588 = vmatpush1.bf16.msra.mxu0 0
        %589 = vmatprep.subr.bf16.mxu0 0
        %590 = vmatpush1.bf16.msra.mxu0 0
        %591 = vmatprep.subr.bf16.mxu0 0
        %592 = vmatpush1.bf16.msra.mxu0 0
        %593 = vmatprep.subr.bf16.mxu0 0
        %594 = vmatpush1.bf16.msra.mxu0 0
        %595 = vmatprep.subr.bf16.mxu0 0
        %596 = vmatpush1.bf16.msra.mxu0 0
        %597 = vmatprep.subr.bf16.mxu0 0
        %598 = vmatpush1.bf16.msra.mxu0 0
        %599 = vmatprep.subr.bf16.mxu0 0
        %600 = vmatpush1.bf16.msra.mxu0 0
        %601 = vmatprep.subr.bf16.mxu0 0
        %602 = vmatpush1.bf16.msra.mxu0 0
        %603 = vmatprep.subr.bf16.mxu0 0
        %604 = vmatpush1.bf16.msra.mxu0 0
        %605 = vmatprep.subr.bf16.mxu0 0
        %606 = vmatpush1.bf16.msra.mxu0 0
        %607 = vmatprep.subr.bf16.mxu0 0
        %608 = vmatpush1.bf16.msra.mxu0 0
        %609 = vmatprep.subr.bf16.mxu0 0
        %610 = vmatpush1.bf16.msra.mxu0 0
        %611 = vmatprep.mubr.bf16.mxu0 0
        %612 = vmatmul.mubr.bf16.gmra.mrb[0].mxu0 %v573
        %v613 = vpop.f32.mrb[0].mxu0
        %v614 = vadd.f32 0.0, %v613
        %v615 = vpop.f32.mrb[0].mxu0
        %v616 = vpop.f32.mrb[0].mxu0
        %v617 = vpop.f32.mrb[0].mxu0
        %618 = vdwg.mxu0
        %619 = vrot.lane.b32.xlu0 %v332, 64
        %v620 = vpop.permute.xlu0 %619
        %v622 = vsel %vm339, %v567, 0
        %v625 = vsel %vm575, %v620, 0
        %627 = vmatprep.subr.bf16.mxu0 0
        %628 = vmatpush1.bf16.msra.mxu0 %v625
        %629 = vmatprep.subr.bf16.mxu0 0
        %630 = vmatpush1.bf16.msra.mxu0 0
        %631 = vmatprep.subr.bf16.mxu0 0
        %632 = vmatpush1.bf16.msra.mxu0 0
        %633 = vmatprep.subr.bf16.mxu0 0
        %634 = vmatpush1.bf16.msra.mxu0 0
        %635 = vmatprep.subr.bf16.mxu0 0
        %636 = vmatpush1.bf16.msra.mxu0 0
        %637 = vmatprep.subr.bf16.mxu0 0
        %638 = vmatpush1.bf16.msra.mxu0 0
        %639 = vmatprep.subr.bf16.mxu0 0
        %640 = vmatpush1.bf16.msra.mxu0 0
        %641 = vmatprep.subr.bf16.mxu0 0
        %642 = vmatpush1.bf16.msra.mxu0 0
        %643 = vmatprep.subr.bf16.mxu0 0
        %644 = vmatpush1.bf16.msra.mxu0 0
        %645 = vmatprep.subr.bf16.mxu0 0
        %646 = vmatpush1.bf16.msra.mxu0 0
        %647 = vmatprep.subr.bf16.mxu0 0
        %648 = vmatpush1.bf16.msra.mxu0 0
        %649 = vmatprep.subr.bf16.mxu0 0
        %650 = vmatpush1.bf16.msra.mxu0 0
        %651 = vmatprep.subr.bf16.mxu0 0
        %652 = vmatpush1.bf16.msra.mxu0 0
        %653 = vmatprep.subr.bf16.mxu0 0
        %654 = vmatpush1.bf16.msra.mxu0 0
        %655 = vmatprep.subr.bf16.mxu0 0
        %656 = vmatpush1.bf16.msra.mxu0 0
        %657 = vmatprep.subr.bf16.mxu0 0
        %658 = vmatpush1.bf16.msra.mxu0 0
        %659 = vmatprep.mubr.bf16.mxu0 0
        %660 = vmatmul.mubr.bf16.gmra.mrb[0].mxu0 %v622
        %v661 = vpop.f32.mrb[0].mxu0
        %v662 = vadd.f32 0.0, %v661
        %v663 = vpop.f32.mrb[0].mxu0
        %v664 = vpop.f32.mrb[0].mxu0
        %v665 = vpop.f32.mrb[0].mxu0
        %666 = vdwg.mxu0
        %667 = vrot.lane.b32.xlu0 %v334, 64
        %v668 = vpop.permute.xlu0 %667
        %v670 = vsel %vm339, %v568, 0
        %v673 = vsel %vm575, %v668, 0
        %675 = vmatprep.subr.bf16.mxu0 0
        %676 = vmatpush1.bf16.msra.mxu0 %v673
        %677 = vmatprep.subr.bf16.mxu0 0
        %678 = vmatpush1.bf16.msra.mxu0 0
        %679 = vmatprep.subr.bf16.mxu0 0
        %680 = vmatpush1.bf16.msra.mxu0 0
        %681 = vmatprep.subr.bf16.mxu0 0
        %682 = vmatpush1.bf16.msra.mxu0 0
        %683 = vmatprep.subr.bf16.mxu0 0
        %684 = vmatpush1.bf16.msra.mxu0 0
        %685 = vmatprep.subr.bf16.mxu0 0
        %686 = vmatpush1.bf16.msra.mxu0 0
        %687 = vmatprep.subr.bf16.mxu0 0
        %688 = vmatpush1.bf16.msra.mxu0 0
        %689 = vmatprep.subr.bf16.mxu0 0
        %690 = vmatpush1.bf16.msra.mxu0 0
        %691 = vmatprep.subr.bf16.mxu0 0
        %692 = vmatpush1.bf16.msra.mxu0 0
        %693 = vmatprep.subr.bf16.mxu0 0
        %694 = vmatpush1.bf16.msra.mxu0 0
        %695 = vmatprep.subr.bf16.mxu0 0
        %696 = vmatpush1.bf16.msra.mxu0 0
        %697 = vmatprep.subr.bf16.mxu0 0
        %698 = vmatpush1.bf16.msra.mxu0 0
        %699 = vmatprep.subr.bf16.mxu0 0
        %700 = vmatpush1.bf16.msra.mxu0 0
        %701 = vmatprep.subr.bf16.mxu0 0
        %702 = vmatpush1.bf16.msra.mxu0 0
        %703 = vmatprep.subr.bf16.mxu0 0
        %704 = vmatpush1.bf16.msra.mxu0 0
        %705 = vmatprep.subr.bf16.mxu0 0
        %706 = vmatpush1.bf16.msra.mxu0 0
        %707 = vmatprep.mubr.bf16.mxu0 0
        %708 = vmatmul.mubr.bf16.gmra.mrb[0].mxu0 %v670
        %v709 = vpop.f32.mrb[0].mxu0
        %v710 = vadd.f32 0.0, %v709
        %v711 = vpop.f32.mrb[0].mxu0
        %v712 = vpop.f32.mrb[0].mxu0
        %v713 = vpop.f32.mrb[0].mxu0
        %714 = vdwg.mxu0
        %715 = vrot.lane.b32.xlu0 %v336, 64
        %v716 = vpop.permute.xlu0 %715
        %v718 = vsel %vm339, %v569, 0
        %v721 = vsel %vm575, %v716, 0
        %723 = vmatprep.subr.bf16.mxu0 0
        %724 = vmatpush1.bf16.msra.mxu0 %v721
        %725 = vmatprep.subr.bf16.mxu0 0
        %726 = vmatpush1.bf16.msra.mxu0 0
        %727 = vmatprep.subr.bf16.mxu0 0
        %728 = vmatpush1.bf16.msra.mxu0 0
        %729 = vmatprep.subr.bf16.mxu0 0
        %730 = vmatpush1.bf16.msra.mxu0 0
        %731 = vmatprep.subr.bf16.mxu0 0
        %732 = vmatpush1.bf16.msra.mxu0 0
        %733 = vmatprep.subr.bf16.mxu0 0
        %734 = vmatpush1.bf16.msra.mxu0 0
        %735 = vmatprep.subr.bf16.mxu0 0
        %736 = vmatpush1.bf16.msra.mxu0 0
        %737 = vmatprep.subr.bf16.mxu0 0
        %738 = vmatpush1.bf16.msra.mxu0 0
        %739 = vmatprep.subr.bf16.mxu0 0
        %740 = vmatpush1.bf16.msra.mxu0 0
        %741 = vmatprep.subr.bf16.mxu0 0
        %742 = vmatpush1.bf16.msra.mxu0 0
        %743 = vmatprep.subr.bf16.mxu0 0
        %744 = vmatpush1.bf16.msra.mxu0 0
        %745 = vmatprep.subr.bf16.mxu0 0
        %746 = vmatpush1.bf16.msra.mxu0 0
        %747 = vmatprep.subr.bf16.mxu0 0
        %748 = vmatpush1.bf16.msra.mxu0 0
        %749 = vmatprep.subr.bf16.mxu0 0
        %750 = vmatpush1.bf16.msra.mxu0 0
        %751 = vmatprep.subr.bf16.mxu0 0
        %752 = vmatpush1.bf16.msra.mxu0 0
        %753 = vmatprep.subr.bf16.mxu0 0
        %754 = vmatpush1.bf16.msra.mxu0 0
        %755 = vmatprep.mubr.bf16.mxu0 0
        %756 = vmatmul.mubr.bf16.gmra.mrb[0].mxu0 %v718
        %v757 = vpop.f32.mrb[0].mxu0
        %v758 = vadd.f32 0.0, %v757
        %v759 = vpop.f32.mrb[0].mxu0
        %v760 = vpop.f32.mrb[0].mxu0
        %v761 = vpop.f32.mrb[0].mxu0
        %762 = vdwg.mxu0
        %v763 = vrcp.pop %v556
        %v764 = vrcp.pop %v559
        %v765 = vrcp.pop %v562
        %v766 = vrcp.pop %v565
        %v767 = vmul.f32 %v614, %v763
        %v768 = vmul.f32 %v662, %v764
        %v769 = vmul.f32 %v710, %v765
        %v770 = vmul.f32 %v758, %v766
        %772 = vrot.lane.b32.xlu0 %v768, 8
        %v773 = vpop.permute.xlu0 %772
        %776 = vrot.lane.b32.xlu0 %v769, 16
        %v777 = vpop.permute.xlu0 %776
        %780 = vrot.lane.b32.xlu0 %v770, 24
        %v781 = vpop.permute.xlu0 %780
        %v783 = vsel %vm339, %v767, %v773
        %vm784 = vcmask 130048
        %v785 = vsel %vm784, %v783, %v777
        %vm786 = vcmask 195584
        %v787 = vsel %vm786, %v785, %v781
        %vm788 = vcmask 261120
        %v789 = vsel %vm788, %v787, 0.0
        %v790 = vpack.c.bf16 %v789, %v789
        %v791 = vld [vmem:[#allocation5] sm:$0xf]
        %v792 = vld [vmem:[#allocation5 + $0x4] sm:$0xf]
        %v793 = vld [vmem:[#allocation5 + $0x8] sm:$0xf]
        %v794 = vld [vmem:[#allocation5 + $0xc] sm:$0xf]
        %v795 = vld [vmem:[#allocation5 + $0x10] sm:$0xf]
        %v796 = vld [vmem:[#allocation5 + $0x14] sm:$0xf]
        %v797 = vld [vmem:[#allocation5 + $0x18] sm:$0xf]
        %v798 = vld [vmem:[#allocation5 + $0x1c] sm:$0xf]
        %v799 = vld [vmem:[#allocation5 + $0x20] sm:$0xf]
        %v800 = vld [vmem:[#allocation5 + $0x24] sm:$0xf]
        %v801 = vld [vmem:[#allocation5 + $0x28] sm:$0xf]
        %v802 = vld [vmem:[#allocation5 + $0x2c] sm:$0xf]
        %v803 = vld [vmem:[#allocation5 + $0x30] sm:$0xf]
        %v804 = vld [vmem:[#allocation5 + $0x34] sm:$0xf]
        %v805 = vld [vmem:[#allocation5 + $0x38] sm:$0xf]
        %v806 = vld [vmem:[#allocation5 + $0x3c] sm:$0xf]
        %v807 = vld [vmem:[%s3] sm:$0x1]
        %v809 = vlaneseq
        %v810 = vshrl.u32 %v809, 7
        %v811 = vsub.s32 0, %v810
        %v812 = vrot.slane %v807, %v811
        %v830 = vunpack.c.l.b16 %v791
        %v831 = vunpack.c.l.b16 %v792
        %v832 = vunpack.c.l.b16 %v793
        %v833 = vunpack.c.l.b16 %v794
        %v834 = vunpack.c.l.b16 %v795
        %v835 = vunpack.c.l.b16 %v796
        %v836 = vunpack.c.l.b16 %v797
        %v837 = vunpack.c.l.b16 %v798
        %v838 = vunpack.c.l.b16 %v799
        %v839 = vunpack.c.l.b16 %v800
        %v840 = vunpack.c.l.b16 %v801
        %v841 = vunpack.c.l.b16 %v802
        %v842 = vunpack.c.l.b16 %v803
        %v843 = vunpack.c.l.b16 %v804
        %v844 = vunpack.c.l.b16 %v805
        %v845 = vunpack.c.l.b16 %v806
        %v846 = vpack.c.b16 %v831, %v830
        %v847 = vpack.c.b16 %v833, %v832
        %v848 = vpack.c.b16 %v835, %v834
        %v849 = vpack.c.b16 %v837, %v836
        %v850 = vpack.c.b16 %v839, %v838
        %v851 = vpack.c.b16 %v841, %v840
        %v852 = vpack.c.b16 %v843, %v842
        %v853 = vpack.c.b16 %v845, %v844
        %862 = vmatprep.subr.bf16.mxu0 0
        %863 = vmatpush1.bf16.msra.mxu0 %v846
        %864 = vmatprep.subr.bf16.mxu0 0
        %865 = vmatpush1.bf16.msra.mxu0 %v847
        %866 = vmatprep.subr.bf16.mxu0 0
        %867 = vmatpush1.bf16.msra.mxu0 %v848
        %868 = vmatprep.subr.bf16.mxu0 0
        %869 = vmatpush1.bf16.msra.mxu0 %v849
        %870 = vmatprep.subr.bf16.mxu0 0
        %871 = vmatpush1.bf16.msra.mxu0 %v850
        %872 = vmatprep.subr.bf16.mxu0 0
        %873 = vmatpush1.bf16.msra.mxu0 %v851
        %874 = vmatprep.subr.bf16.mxu0 0
        %875 = vmatpush1.bf16.msra.mxu0 %v852
        %876 = vmatprep.subr.bf16.mxu0 0
        %877 = vmatpush1.bf16.msra.mxu0 %v853
        %878 = vmatprep.subr.bf16.mxu0 0
        %879 = vmatpush1.bf16.msra.mxu0 0
        %880 = vmatprep.subr.bf16.mxu0 0
        %881 = vmatpush1.bf16.msra.mxu0 0
        %882 = vmatprep.subr.bf16.mxu0 0
        %883 = vmatpush1.bf16.msra.mxu0 0
        %884 = vmatprep.subr.bf16.mxu0 0
        %885 = vmatpush1.bf16.msra.mxu0 0
        %886 = vmatprep.subr.bf16.mxu0 0
        %887 = vmatpush1.bf16.msra.mxu0 0
        %888 = vmatprep.subr.bf16.mxu0 0
        %889 = vmatpush1.bf16.msra.mxu0 0
        %890 = vmatprep.subr.bf16.mxu0 0
        %891 = vmatpush1.bf16.msra.mxu0 0
        %892 = vmatprep.subr.bf16.mxu0 0
        %893 = vmatpush1.bf16.msra.mxu0 0
        %894 = vmatprep.mubr.bf16.mxu0 0
        %895 = vmatmul.mubr.bf16.gmra.mrb[0].mxu0 %v790
        %v896 = vpop.f32.mrb[0].mxu0
        %v897 = vadd.f32 %v812, %v896
        %v898 = vpop.f32.mrb[0].mxu0
        %v899 = vpop.f32.mrb[0].mxu0
        %v900 = vpop.f32.mrb[0].mxu0
        %901 = vdwg.mxu0
        %v902 = vlaneseq
        %v903 = vshrl.u32 %v902, 7
        %vm904 = vcmp.lt.s32.totalorder %v903, 0
        %v905 = vsub.s32 0, %v903
        %v906 = vsel %vm904, %v905, %v903
        %v907 = vshrl.u32 %v906, 3
        %v908 = vand.u32 %v906, 7
        %v909 = vsub.s32 0, %v908
        %v910 = vsel %vm904, %v909, %v908
        %vm911 = vcmp.ne.s32.totalorder %v910, 0
        %vm912 = vcmp.lt.s32.totalorder %v910, 0
        %vm913 = vmand %vm912, %vm911
        %v914 = vadd.s32 %v910, 8
        %v915 = vsel %vm913, %v914, %v910
        %vm916 = vcmp.eq.s32.totalorder %v915, 0
        %v917 = vsel %vm916, %v789, %v897
        %918 = vst [vmem:[%s218] sm:$0xff] %v917
        %s919 = sand.u32 %s117, 1
        %s920 = scalar_lea.sflag [#allocation4], %s919
        %s921 = sand.u32 %s117, 1
        %s922 = smul.addr %s921, 8
        %s923 = scalar_lea.vmem [#allocation7], %s922
        // Predicated region
        $region45: #{mhsa_forward.1} parent=35 // pred_check
          %p924 = pneg %p127
        $region46: #{mhsa_forward.1} parent=35 // pred_check_branch
          %926 = sbr.rel (%p924) target = $region48
        $region47: #{mhsa_forward.1} parent=35 // pred_region
          %s928 = ssub.s32 128, 128
          %929 = vsyncadd %s920, %s928
          %s930 = smul.addr %s20, 128
          %s931 = scalar_lea.hbm %s4, %s930
          %s933 = sshll.u32 %s923, 4
          %s934 = int_to_ptr.vmem [resolvable:$true] %s933
          %936 = dma.vmem_to_hbm [thread:$0]  %s934, 128, %s931, %s920
        $region48: #{mhsa_forward.1} parent=35 // pred_fallthru
          _
      $region36: #{mhsa_forward.1} parent=5 // pred_fallthru
        _
      %p937 = scmp.le.s32.totalorder 2, %s15
      // Predicated region
      $region49: #{mhsa_forward.1} parent=5 // pred_check
        %p938 = pneg %p937
      $region50: #{mhsa_forward.1} parent=5 // pred_check_branch
        %940 = sbr.rel (%p938) target = $region52
      $region51: #{mhsa_forward.1} parent=5 // pred_region
        %s941 = ssub.s32 %s15, 2
        // Predicated region
        $region53: #{mhsa_forward.1} parent=51 // pred_check
          %p942 = pneg %p133
        $region54: #{mhsa_forward.1} parent=51 // pred_check_branch
          %944 = sbr.rel (%p942) target = $region56
        $region55: #{mhsa_forward.1} parent=51 // pred_region
          %s945 = sand.u32 %s118, 1
          %s946 = scalar_lea.sflag [#allocation4], %s945
          %s947 = sand.u32 %s118, 1
          %s948 = smul.addr %s947, 8
          %s949 = scalar_lea.vmem [#allocation7], %s948
          %950 = dma.done %s946, 128
        $region56: #{mhsa_forward.1} parent=51 // pred_fallthru
          _
      $region52: #{mhsa_forward.1} parent=5 // pred_fallthru
        _
    $region6: #{mhsa_forward.1} parent=1 // loop_footer
      %s19 = sadd.s32 1, %s15
    $region7: #{mhsa_forward.1} parent=1 // loop_footer_branch
      %14 = sbr.rel target = $region3
    $region8: #{mhsa_forward.1} parent=1 // loop_exit
      _
    %951 = vsyncpa [#allocation3], 1
    %s952 = scalar_lea.sflag [#allocation3], 1
    %953 = vsyncpa %s952, 1
    %954 = vsyncpa [#allocation6], 1
    %955 = vsyncpa [#allocation4], 1
    %s956 = scalar_lea.sflag [#allocation4], 1
    %957 = vsyncpa %s956, 1

</llo_original>
